<compile_context>
chip_gen: v5e
topology: v5e:2x2
jax: 0.10.0
libtpu: 0.0.40
codegen_flags: <defaults>
</compile_context>

<pallas_src>
import functools

import jax
import jax.numpy as jnp
from jax.experimental import pallas as pl
from jax.experimental.pallas import tpu as pltpu

LANE = 128


def _round_up(x, m):
    return ((x + m - 1) // m) * m


def _conv_stats_kernel(x_ref, halo_ref, w_ref, conv_ref, psum_ref, psumsq_ref, *,
                       shifts, tile_p, need_mask, wp, wout, p_valid, tiles_per_chunk):
    """One (batch, chunk, tile) step: conv tile via shifted matmuls + running CIN stats.

    x_ref:    (1, C_eff, tile_p)          bf16  lane-dense slab of the flattened input
    halo_ref: (1, C_eff, d_pad)           bf16  next d_pad lanes (for the shifted taps)
    w_ref:    (len(shifts), Cout, C_eff)  bf16
    conv_ref: (1, Cout, tile_p)           bf16  written every tile
    psum/psumsq: (1, 1, Cout, 1) f32  per-(batch, chunk) partials, resident over tiles.
    """
    c = pl.program_id(1)
    t = pl.program_id(2)

    @pl.when(t == 0)
    def _():
        psum_ref[...] = jnp.zeros_like(psum_ref)
        psumsq_ref[...] = jnp.zeros_like(psumsq_ref)

    single = (len(shifts) == 1 and shifts[0] == 0)
    if single:
        f = x_ref[0]                                            # (C_eff, tile_p)
    else:
        f = jnp.concatenate([x_ref[0], halo_ref[0]], axis=-1)   # (C_eff, tile_p + d_pad)

    cout = conv_ref.shape[1]
    acc = jnp.zeros((cout, tile_p), jnp.float32)
    for i, d in enumerate(shifts):                              # implicit im2col: K*K taps
        xs = f if (d == 0 and f.shape[-1] == tile_p) else f[:, d:d + tile_p]
        acc = acc + jnp.dot(w_ref[i], xs, preferred_element_type=jnp.float32)

    conv_ref[0] = acc.astype(conv_ref.dtype)

    if need_mask:
        # Valid output positions of the flattened-(Hout, Wp) layout:
        #   (pos % wp) < wout  (columns [wout, wp) are windows wrapping a row)  and
        #   pos < p_valid      (tail padding of the last tile).
        base = (c * tiles_per_chunk + t) * tile_p
        lane_i = jax.lax.broadcasted_iota(jnp.int32, (1, tile_p), 1)
        pos = base + lane_i
        # pos % wp in f32 (exact: all intermediates are integers < 2^24; the +0.5 margin
        # makes the floor-divide robust at exact multiples of wp).
        base_f = base.astype(jnp.float32)
        row_b = jnp.floor((base_f + 0.5) * (1.0 / wp))
        col = (base_f - row_b * wp) + lane_i.astype(jnp.float32)
        col = col - jnp.floor((col + 0.5) * (1.0 / wp)) * wp
        valid = (col < wout) & (pos < p_valid)
        stats = jnp.where(valid, acc, 0.0)
    else:
        # Patches path: zero-padded tail columns give exactly-zero conv (no bias term).
        stats = acc

    psum_ref[0, 0] += jnp.sum(stats, axis=1, keepdims=True)
    psumsq_ref[0, 0] += jnp.sum(stats * stats, axis=1, keepdims=True)


def _norm_kernel(conv_ref, scale_ref, shift_ref, out_ref, *, wout):
    """Row-tiled CIN affine: out = conv * scale + shift; drops the wp->wout junk cols."""
    conv = conv_ref[0, :, :, :wout].astype(jnp.float32)        # (Cout, TH, Wout)
    out_ref[0] = conv * scale_ref[0] + shift_ref[0]


def conv_layer_forward(x, style_id, weight, bias, gamma, beta, *,
                       stride, tile_hw=4096, eps=1e-5):
    """x: (N, C_in, H, W) f32; style_id: (N,) int32; weight: (C_out, C_in, K, K);
    bias: (C_out,) (dropped: cancels exactly under the CIN mean subtraction);
    gamma/beta: (num_styles, C_out). Returns (N, C_out, H_out, W_out) f32."""
    del bias  # exact no-op here because the conv output is always instance-normalized.

    N, Cin, H, W = x.shape
    Cout, _, K, _ = weight.shape
    pad = K // 2

    # ---------------- XLA glue: reflection pad (bf16) + layout plumbing ----------------
    x_pad = jnp.pad(x.astype(jnp.bfloat16),
                    ((0, 0), (0, 0), (pad, pad), (pad, pad)), mode="reflect")
    Hp, Wp = H + 2 * pad, W + 2 * pad
    Hout = (Hp - K) // stride + 1
    Wout = (Wp - K) // stride + 1
    HW = Hout * Wout

    if stride == 1:
        # Implicit im2col: feed only the flattened padded input; no K*K inflation.
        c_eff = Cin
        wp_in = Wp
        feat = x_pad.reshape(N, Cin, Hp * Wp)
        shifts = tuple(ky * Wp + kx for ky in range(K) for kx in range(K))
        w_k = jnp.transpose(weight, (2, 3, 0, 1)).reshape(K * K, Cout, Cin)
        need_mask = (Wout != Wp)
    else:
        # Fallback for strided convs: explicit im2col patches (K*K HBM inflation).
        # TODO(synk): strided implicit im2col (row-slab DMA) would remove this path too.
        c_eff = Cin * K * K
        wp_in = Wout
        cols = []
        for ky in range(K):
            for kx in range(K):
                cols.append(x_pad[:, :, ky:ky + Hout * stride:stride,
                                  kx:kx + Wout * stride:stride])
        feat = jnp.stack(cols, axis=2).reshape(N, c_eff, HW)
        shifts = (0,)
        w_k = weight.reshape(1, Cout, c_eff)
        need_mask = False
    w_k = w_k.astype(jnp.bfloat16)

    P = Hout * wp_in                      # flat length produced by kernel 1
    d_max = max(shifts)
    d_pad = max(LANE, _round_up(max(d_max, 1), LANE))

    # Tile size from a v7x-safe VMEM budget (double-buffered bf16 in + bf16 out),
    # constrained to a multiple of d_pad (aligned halo block) and <= P.
    budget = 24 * 1024 * 1024
    per_lane = 2 * 2 * (c_eff + Cout)
    tile_p = max(LANE, min(int(tile_hw), budget // per_lane))
    p_floor = (P // d_pad) * d_pad
    if p_floor >= d_pad:
        tile_p = max(d_pad, min(tile_p, p_floor))
        tile_p = (tile_p // d_pad) * d_pad
        p_store = P                       # last block is write-clipped; no final slice
    else:                                 # degenerate tiny spatial extent
        tile_p = d_pad
        p_store = d_pad
    num_tiles = -(-P // tile_p)
    halo_mult = tile_p // d_pad

    # Chunk the tile axis ("parallel") so v7x's second TensorCore has work at small N.
    target_chunks = min(num_tiles, max(1, -(-8 // N)))
    n_chunks = 1
    for cand in range(target_chunks, 0, -1):
        if num_tiles % cand == 0:
            n_chunks = cand
            break
    tpc = num_tiles // n_chunks

    flat_len = num_tiles * tile_p + d_pad
    feat = jnp.pad(feat, ((0, 0), (0, 0), (0, max(0, flat_len - feat.shape[-1]))))

    halo_index = ((lambda n, c, t: (n, 0, (c * tpc + t + 1) * halo_mult))
                  if d_max > 0 else (lambda n, c, t: (n, 0, 0)))

    kernel1 = functools.partial(
        _conv_stats_kernel, shifts=shifts, tile_p=tile_p, need_mask=need_mask,
        wp=wp_in, wout=Wout, p_valid=P, tiles_per_chunk=tpc)

    # ---- kernel 1: implicit-im2col conv tiles (bf16) + per-(batch, chunk) stats ----
    conv_flat, psum, psumsq = pl.pallas_call(
        kernel1,
        out_shape=(
            jax.ShapeDtypeStruct((N, Cout, p_store), jnp.bfloat16),
            jax.ShapeDtypeStruct((N, n_chunks, Cout, 1), jnp.float32),
            jax.ShapeDtypeStruct((N, n_chunks, Cout, 1), jnp.float32),
        ),
        grid_spec=pltpu.PrefetchScalarGridSpec(
            num_scalar_prefetch=0,
            grid=(N, n_chunks, tpc),
            in_specs=[
                pl.BlockSpec((1, c_eff, tile_p),
                             lambda n, c, t: (n, 0, c * tpc + t)),
                pl.BlockSpec((1, c_eff, d_pad), halo_index),
                pl.BlockSpec((len(shifts), Cout, c_eff), lambda n, c, t: (0, 0, 0)),
            ],
            out_specs=[
                pl.BlockSpec((1, Cout, tile_p),
                             lambda n, c, t: (n, 0, c * tpc + t)),
                pl.BlockSpec((1, 1, Cout, 1), lambda n, c, t: (n, c, 0, 0)),
                pl.BlockSpec((1, 1, Cout, 1), lambda n, c, t: (n, c, 0, 0)),
            ],
        ),
        compiler_params=pltpu.CompilerParams(
            dimension_semantics=("parallel", "parallel", "arbitrary"),
            vmem_limit_bytes=48 * 1024 * 1024,
        ),
        cost_estimate=pl.CostEstimate(
            flops=int(2 * N * num_tiles * tile_p * c_eff * Cout * len(shifts)),
            transcendentals=0,
            bytes_accessed=int(2 * feat.size + 2 * N * Cout * p_store),
        ),
    )(feat, feat, w_k)

    # ---------------- CIN statistics fold (tiny, plain XLA) ----------------
    cnt = float(HW)
    s = jnp.sum(psum, axis=1)[..., 0]          # (N, Cout)
    ss = jnp.sum(psumsq, axis=1)[..., 0]
    mean = s / cnt
    denom = max(cnt - 1.0, 1.0)                # torch.std(): unbiased; guard HW == 1
    # TODO(synk): E[x^2] - mean^2 in f32 can cancel when |mean| >> std; a Chan/Welford
    # combine of the per-chunk partials would fix it without extra passes.
    var = jnp.maximum((ss - cnt * mean * mean) / denom, 0.0)
    std = jnp.sqrt(var)
    gamma_sel = gamma[style_id].astype(jnp.float32)
    beta_sel = beta[style_id].astype(jnp.float32)
    scale = gamma_sel / (std + eps)            # matches (x - mean) / (std + eps) * gamma
    shift = beta_sel - mean * scale
    scale = scale[:, :, None, None]
    shift = shift[:, :, None, None]

    if p_store != P:
        conv_flat = conv_flat[:, :, :P]
    conv4 = conv_flat.reshape(N, Cout, Hout, wp_in)   # free: p_store == Hout * wp_in

    # ---- kernel 2: row-tiled normalization FMA, writes NCHW f32 output directly ----
    # TODO(synk): on v6e, sweeping pipeline_mode=pl.Buffered(3) on the conv input may
    # hide DMA latency further (128 MiB VMEM headroom); kept default-depth for v7x.
    th_cap = max(1, (16 * 1024 * 1024) // (2 * Cout * (wp_in * 2 + Wout * 4)))
    if Hout <= th_cap:
        th = Hout
    else:
        th = min(Hout, max(8, (th_cap // 8) * 8))
    rows = -(-Hout // th)

    out = pl.pallas_call(
        functools.partial(_norm_kernel, wout=Wout),
        out_shape=jax.ShapeDtypeStruct((N, Cout, Hout, Wout), jnp.float32),
        grid_spec=pltpu.PrefetchScalarGridSpec(
            num_scalar_prefetch=0,
            grid=(N, rows),
            in_specs=[
                pl.BlockSpec((1, Cout, th, wp_in), lambda n, r: (n, 0, r, 0)),
                pl.BlockSpec((1, Cout, 1, 1), lambda n, r: (n, 0, 0, 0)),
                pl.BlockSpec((1, Cout, 1, 1), lambda n, r: (n, 0, 0, 0)),
            ],
            out_specs=pl.BlockSpec((1, Cout, th, Wout), lambda n, r: (n, 0, r, 0)),
        ),
        compiler_params=pltpu.CompilerParams(
            dimension_semantics=("parallel", "parallel"),
            vmem_limit_bytes=48 * 1024 * 1024,
        ),
        cost_estimate=pl.CostEstimate(
            flops=int(2 * N * Cout * Hout * Wout),
            transcendentals=0,
            bytes_accessed=int(N * Cout * Hout * (wp_in * 2 + Wout * 4)),
        ),
    )(conv4, scale, shift)
    return out


if __name__ == "__main__":
    # Small, deterministic configuration.
    N, Cin, H, W = 2, 4, 16, 16
    Cout, K, stride, num_styles = 8, 3, 1, 4

    key = jax.random.PRNGKey(0)
    kx, kw, kb, ks = jax.random.split(key, 4)

    x = jax.random.normal(kx, (N, Cin, H, W), dtype=jnp.float32)
    style_id = jax.random.randint(ks, (N,), 0, num_styles, dtype=jnp.int32)

    weight = 0.1 * jax.random.normal(kw, (Cout, Cin, K, K), dtype=jnp.float32)
    bias = 0.01 * jax.random.normal(kb, (Cout,), dtype=jnp.float32)
    gamma = jnp.ones((num_styles, Cout), dtype=jnp.float32)   # CIN gamma init = ones
    beta = jnp.zeros((num_styles, Cout), dtype=jnp.float32)   # CIN beta init = zeros

    out = conv_layer_forward(x, style_id, weight, bias, gamma, beta, stride=stride)
    out = jax.block_until_ready(out)
    assert out.shape == (N, Cout, H, W), out.shape
    assert bool(jnp.isfinite(out).all())

    # f32 reference (reflection pad -> conv2d(+bias) -> CIN with unbiased std).
    pad = K // 2
    xp = jnp.pad(x, ((0, 0), (0, 0), (pad, pad), (pad, pad)), mode="reflect")
    Ho = (H + 2 * pad - K) // stride + 1
    Wo = (W + 2 * pad - K) // stride + 1
    cols = [xp[:, :, ky:ky + Ho * stride:stride, kx:kx + Wo * stride:stride]
            for ky in range(K) for kx in range(K)]
    pr = jnp.stack(cols, axis=2).reshape(N, Cin * K * K, Ho * Wo)
    convr = jnp.einsum('ok,nkp->nop', weight.reshape(Cout, -1), pr) + bias[None, :, None]
    m = convr.mean(axis=2, keepdims=True)
    sd = jnp.std(convr, axis=2, ddof=1, keepdims=True)
    g = gamma[style_id][:, :, None]
    b = beta[style_id][:, :, None]
    ref = ((convr - m) / (sd + 1e-5) * g + b).reshape(N, Cout, Ho, Wo)
    err = float(jnp.max(jnp.abs(out - ref)))
    assert err < 0.1, f"max abs err vs f32 reference = {err}"
    print("KERNEL_OK")
</pallas_src>

<mosaic_0001>
module attributes {stable_mosaic.version = 11 : i64} {
  func.func @_conv_stats_kernel(%arg0: i32, %arg1: i32, %arg2: i32, %arg3: memref<1x4x256xbf16, #tpu.memory_space<vmem>>, %arg4: memref<1x4x128xbf16, #tpu.memory_space<vmem>>, %arg5: memref<9x8x4xbf16, #tpu.memory_space<vmem>>, %arg6: memref<1x8x256xbf16, #tpu.memory_space<vmem>>, %arg7: memref<1x1x8x1xf32, #tpu.memory_space<vmem>>, %arg8: memref<1x1x8x1xf32, #tpu.memory_space<vmem>>) attributes {dimension_semantics = [#tpu.dimension_semantics<parallel>, #tpu.dimension_semantics<parallel>, #tpu.dimension_semantics<arbitrary>], iteration_bounds = array<i64: 2, 2, 1>, scalar_prefetch = 0 : i64, scratch_operands = 0 : i64, tpu.core_type = #tpu.core_type<tc>, window_params = [{transform_indices = @transform_0, window_bounds = array<i64: 1, 4, 256>}, {transform_indices = @transform_1, window_bounds = array<i64: 1, 4, 128>}, {pipeline_mode = #tpu.pipeline_mode<synchronous>, transform_indices = @transform_2, window_bounds = array<i64: 9, 8, 4>}, {transform_indices = @transform_3, window_bounds = array<i64: 1, 8, 256>}, {transform_indices = @transform_4, window_bounds = array<i64: 1, 1, 8, 1>}, {transform_indices = @transform_5, window_bounds = array<i64: 1, 1, 8, 1>}]} {
    %c0_i32 = arith.constant 0 : i32
    %0 = arith.cmpi eq, %arg2, %c0_i32 : i32
    %1 = arith.extui %0 : i1 to i32
    %c0_i32_0 = arith.constant 0 : i32
    %2 = arith.cmpi ne, %1, %c0_i32_0 : i32
    scf.if %2 {
      %cst_63 = arith.constant 0.000000e+00 : f32
      %107 = vector.broadcast %cst_63 : f32 to vector<1x1x8x1xf32>
      %c0_64 = arith.constant 0 : index
      %c0_65 = arith.constant 0 : index
      %c0_66 = arith.constant 0 : index
      %c0_67 = arith.constant 0 : index
      %108 = vector.load %arg7[%c0_64, %c0_65, %c0_66, %c0_67] : memref<1x1x8x1xf32, #tpu.memory_space<vmem>>, vector<1x1x8x1xf32>
      tpu.vector_store %arg7[%c0_64, %c0_65, %c0_66, %c0_67], %107 {strides = array<i32>} : memref<1x1x8x1xf32, #tpu.memory_space<vmem>>, vector<1x1x8x1xf32>,
      %cst_68 = arith.constant 0.000000e+00 : f32
      %109 = vector.broadcast %cst_68 : f32 to vector<1x1x8x1xf32>
      %c0_69 = arith.constant 0 : index
      %c0_70 = arith.constant 0 : index
      %c0_71 = arith.constant 0 : index
      %c0_72 = arith.constant 0 : index
      %110 = vector.load %arg8[%c0_69, %c0_70, %c0_71, %c0_72] : memref<1x1x8x1xf32, #tpu.memory_space<vmem>>, vector<1x1x8x1xf32>
      tpu.vector_store %arg8[%c0_69, %c0_70, %c0_71, %c0_72], %109 {strides = array<i32>} : memref<1x1x8x1xf32, #tpu.memory_space<vmem>>, vector<1x1x8x1xf32>,
    } else {
    }
    %c0 = arith.constant 0 : index
    %c0_1 = arith.constant 0 : index
    %c0_2 = arith.constant 0 : index
    %3 = vector.load %arg3[%c0, %c0_1, %c0_2] : memref<1x4x256xbf16, #tpu.memory_space<vmem>>, vector<1x4x256xbf16>
    %4 = vector.shape_cast %3 : vector<1x4x256xbf16> to vector<4x256xbf16>
    %c0_3 = arith.constant 0 : index
    %c0_4 = arith.constant 0 : index
    %c0_5 = arith.constant 0 : index
    %5 = vector.load %arg4[%c0_3, %c0_4, %c0_5] : memref<1x4x128xbf16, #tpu.memory_space<vmem>>, vector<1x4x128xbf16>
    %6 = vector.shape_cast %5 : vector<1x4x128xbf16> to vector<4x128xbf16>
    %7 = tpu.concatenate %4, %6 in 1 : vector<4x256xbf16>, vector<4x128xbf16> -> vector<4x384xbf16>
    %cst = arith.constant 0.000000e+00 : f32
    %8 = vector.broadcast %cst : f32 to vector<8x256xf32>
    %9 = vector.extract_strided_slice %7 {offsets = [0, 0], sizes = [4, 256], strides = [1, 1]} : vector<4x384xbf16> to vector<4x256xbf16>
    %c0_6 = arith.constant 0 : index
    %c0_7 = arith.constant 0 : index
    %c0_8 = arith.constant 0 : index
    %10 = vector.load %arg5[%c0_6, %c0_7, %c0_8] : memref<9x8x4xbf16, #tpu.memory_space<vmem>>, vector<1x8x4xbf16>
    %11 = vector.shape_cast %10 : vector<1x8x4xbf16> to vector<8x4xbf16>
    %cst_9 = arith.constant dense<0.000000e+00> : vector<8x256xf32>
    %12 = tpu.matmul %11, %9, %cst_9 {dimension_numbers = #tpu.dot_dimension_numbers<[1], [0], [0], [1], [0, 0, 1, 1], [], []>} : vector<8x4xbf16>, vector<4x256xbf16>, vector<8x256xf32> -> vector<8x256xf32>
    %13 = arith.addf %8, %12 : vector<8x256xf32>
    %14 = vector.extract_strided_slice %7 {offsets = [0, 1], sizes = [4, 256], strides = [1, 1]} : vector<4x384xbf16> to vector<4x256xbf16>
    %c1 = arith.constant 1 : index
    %c0_10 = arith.constant 0 : index
    %c0_11 = arith.constant 0 : index
    %15 = vector.load %arg5[%c1, %c0_10, %c0_11] : memref<9x8x4xbf16, #tpu.memory_space<vmem>>, vector<1x8x4xbf16>
    %16 = vector.shape_cast %15 : vector<1x8x4xbf16> to vector<8x4xbf16>
    %cst_12 = arith.constant dense<0.000000e+00> : vector<8x256xf32>
    %17 = tpu.matmul %16, %14, %cst_12 {dimension_numbers = #tpu.dot_dimension_numbers<[1], [0], [0], [1], [0, 0, 1, 1], [], []>} : vector<8x4xbf16>, vector<4x256xbf16>, vector<8x256xf32> -> vector<8x256xf32>
    %18 = arith.addf %13, %17 : vector<8x256xf32>
    %19 = vector.extract_strided_slice %7 {offsets = [0, 2], sizes = [4, 256], strides = [1, 1]} : vector<4x384xbf16> to vector<4x256xbf16>
    %c2 = arith.constant 2 : index
    %c0_13 = arith.constant 0 : index
    %c0_14 = arith.constant 0 : index
    %20 = vector.load %arg5[%c2, %c0_13, %c0_14] : memref<9x8x4xbf16, #tpu.memory_space<vmem>>, vector<1x8x4xbf16>
    %21 = vector.shape_cast %20 : vector<1x8x4xbf16> to vector<8x4xbf16>
    %cst_15 = arith.constant dense<0.000000e+00> : vector<8x256xf32>
    %22 = tpu.matmul %21, %19, %cst_15 {dimension_numbers = #tpu.dot_dimension_numbers<[1], [0], [0], [1], [0, 0, 1, 1], [], []>} : vector<8x4xbf16>, vector<4x256xbf16>, vector<8x256xf32> -> vector<8x256xf32>
    %23 = arith.addf %18, %22 : vector<8x256xf32>
    %24 = vector.extract_strided_slice %7 {offsets = [0, 18], sizes = [4, 256], strides = [1, 1]} : vector<4x384xbf16> to vector<4x256xbf16>
    %c3 = arith.constant 3 : index
    %c0_16 = arith.constant 0 : index
    %c0_17 = arith.constant 0 : index
    %25 = vector.load %arg5[%c3, %c0_16, %c0_17] : memref<9x8x4xbf16, #tpu.memory_space<vmem>>, vector<1x8x4xbf16>
    %26 = vector.shape_cast %25 : vector<1x8x4xbf16> to vector<8x4xbf16>
    %cst_18 = arith.constant dense<0.000000e+00> : vector<8x256xf32>
    %27 = tpu.matmul %26, %24, %cst_18 {dimension_numbers = #tpu.dot_dimension_numbers<[1], [0], [0], [1], [0, 0, 1, 1], [], []>} : vector<8x4xbf16>, vector<4x256xbf16>, vector<8x256xf32> -> vector<8x256xf32>
    %28 = arith.addf %23, %27 : vector<8x256xf32>
    %29 = vector.extract_strided_slice %7 {offsets = [0, 19], sizes = [4, 256], strides = [1, 1]} : vector<4x384xbf16> to vector<4x256xbf16>
    %c4 = arith.constant 4 : index
    %c0_19 = arith.constant 0 : index
    %c0_20 = arith.constant 0 : index
    %30 = vector.load %arg5[%c4, %c0_19, %c0_20] : memref<9x8x4xbf16, #tpu.memory_space<vmem>>, vector<1x8x4xbf16>
    %31 = vector.shape_cast %30 : vector<1x8x4xbf16> to vector<8x4xbf16>
    %cst_21 = arith.constant dense<0.000000e+00> : vector<8x256xf32>
    %32 = tpu.matmul %31, %29, %cst_21 {dimension_numbers = #tpu.dot_dimension_numbers<[1], [0], [0], [1], [0, 0, 1, 1], [], []>} : vector<8x4xbf16>, vector<4x256xbf16>, vector<8x256xf32> -> vector<8x256xf32>
    %33 = arith.addf %28, %32 : vector<8x256xf32>
    %34 = vector.extract_strided_slice %7 {offsets = [0, 20], sizes = [4, 256], strides = [1, 1]} : vector<4x384xbf16> to vector<4x256xbf16>
    %c5 = arith.constant 5 : index
    %c0_22 = arith.constant 0 : index
    %c0_23 = arith.constant 0 : index
    %35 = vector.load %arg5[%c5, %c0_22, %c0_23] : memref<9x8x4xbf16, #tpu.memory_space<vmem>>, vector<1x8x4xbf16>
    %36 = vector.shape_cast %35 : vector<1x8x4xbf16> to vector<8x4xbf16>
    %cst_24 = arith.constant dense<0.000000e+00> : vector<8x256xf32>
    %37 = tpu.matmul %36, %34, %cst_24 {dimension_numbers = #tpu.dot_dimension_numbers<[1], [0], [0], [1], [0, 0, 1, 1], [], []>} : vector<8x4xbf16>, vector<4x256xbf16>, vector<8x256xf32> -> vector<8x256xf32>
    %38 = arith.addf %33, %37 : vector<8x256xf32>
    %39 = vector.extract_strided_slice %7 {offsets = [0, 36], sizes = [4, 256], strides = [1, 1]} : vector<4x384xbf16> to vector<4x256xbf16>
    %c6 = arith.constant 6 : index
    %c0_25 = arith.constant 0 : index
    %c0_26 = arith.constant 0 : index
    %40 = vector.load %arg5[%c6, %c0_25, %c0_26] : memref<9x8x4xbf16, #tpu.memory_space<vmem>>, vector<1x8x4xbf16>
    %41 = vector.shape_cast %40 : vector<1x8x4xbf16> to vector<8x4xbf16>
    %cst_27 = arith.constant dense<0.000000e+00> : vector<8x256xf32>
    %42 = tpu.matmul %41, %39, %cst_27 {dimension_numbers = #tpu.dot_dimension_numbers<[1], [0], [0], [1], [0, 0, 1, 1], [], []>} : vector<8x4xbf16>, vector<4x256xbf16>, vector<8x256xf32> -> vector<8x256xf32>
    %43 = arith.addf %38, %42 : vector<8x256xf32>
    %44 = vector.extract_strided_slice %7 {offsets = [0, 37], sizes = [4, 256], strides = [1, 1]} : vector<4x384xbf16> to vector<4x256xbf16>
    %c7 = arith.constant 7 : index
    %c0_28 = arith.constant 0 : index
    %c0_29 = arith.constant 0 : index
    %45 = vector.load %arg5[%c7, %c0_28, %c0_29] : memref<9x8x4xbf16, #tpu.memory_space<vmem>>, vector<1x8x4xbf16>
    %46 = vector.shape_cast %45 : vector<1x8x4xbf16> to vector<8x4xbf16>
    %cst_30 = arith.constant dense<0.000000e+00> : vector<8x256xf32>
    %47 = tpu.matmul %46, %44, %cst_30 {dimension_numbers = #tpu.dot_dimension_numbers<[1], [0], [0], [1], [0, 0, 1, 1], [], []>} : vector<8x4xbf16>, vector<4x256xbf16>, vector<8x256xf32> -> vector<8x256xf32>
    %48 = arith.addf %43, %47 : vector<8x256xf32>
    %49 = vector.extract_strided_slice %7 {offsets = [0, 38], sizes = [4, 256], strides = [1, 1]} : vector<4x384xbf16> to vector<4x256xbf16>
    %c8 = arith.constant 8 : index
    %c0_31 = arith.constant 0 : index
    %c0_32 = arith.constant 0 : index
    %50 = vector.load %arg5[%c8, %c0_31, %c0_32] : memref<9x8x4xbf16, #tpu.memory_space<vmem>>, vector<1x8x4xbf16>
    %51 = vector.shape_cast %50 : vector<1x8x4xbf16> to vector<8x4xbf16>
    %cst_33 = arith.constant dense<0.000000e+00> : vector<8x256xf32>
    %52 = tpu.matmul %51, %49, %cst_33 {dimension_numbers = #tpu.dot_dimension_numbers<[1], [0], [0], [1], [0, 0, 1, 1], [], []>} : vector<8x4xbf16>, vector<4x256xbf16>, vector<8x256xf32> -> vector<8x256xf32>
    %53 = arith.addf %48, %52 : vector<8x256xf32>
    %54 = arith.truncf %53 : vector<8x256xf32> to vector<8x256xbf16>
    %c0_34 = arith.constant 0 : index
    %c0_35 = arith.constant 0 : index
    %c0_36 = arith.constant 0 : index
    %55 = vector.load %arg6[%c0_34, %c0_35, %c0_36] : memref<1x8x256xbf16, #tpu.memory_space<vmem>>, vector<1x8x256xbf16>
    %56 = vector.shape_cast %55 : vector<1x8x256xbf16> to vector<8x256xbf16>
    %57 = vector.shape_cast %54 : vector<8x256xbf16> to vector<1x8x256xbf16>
    tpu.vector_store %arg6[%c0_34, %c0_35, %c0_36], %57 {strides = array<i32>} : memref<1x8x256xbf16, #tpu.memory_space<vmem>>, vector<1x8x256xbf16>,
    %c1_i32 = arith.constant 1 : i32
    %58 = arith.muli %arg1, %c1_i32 : i32
    %59 = arith.addi %58, %arg2 : i32
    %c256_i32 = arith.constant 256 : i32
    %60 = arith.muli %59, %c256_i32 : i32
    %61 = tpu.iota {dimensions = array<i32: 1>} : vector<1x256xi32>
    %62 = vector.broadcast %60 : i32 to vector<1x256xi32>
    %63 = arith.addi %62, %61 : vector<1x256xi32>
    %64 = arith.sitofp %60 : i32 to f32
    %cst_37 = arith.constant 5.000000e-01 : f32
    %65 = arith.addf %64, %cst_37 : f32
    %cst_38 = arith.constant 0.055555556 : f32
    %66 = arith.mulf %65, %cst_38 : f32
    %67 = math.floor %66 : f32
    %cst_39 = arith.constant 1.800000e+01 : f32
    %68 = arith.mulf %67, %cst_39 : f32
    %69 = arith.subf %64, %68 : f32
    %70 = arith.sitofp %61 : vector<1x256xi32> to vector<1x256xf32>
    %71 = vector.broadcast %69 : f32 to vector<1x256xf32>
    %72 = arith.addf %71, %70 : vector<1x256xf32>
    %cst_40 = arith.constant 5.000000e-01 : f32
    %73 = vector.broadcast %cst_40 : f32 to vector<1x256xf32>
    %74 = arith.addf %72, %73 : vector<1x256xf32>
    %cst_41 = arith.constant 0.055555556 : f32
    %75 = vector.broadcast %cst_41 : f32 to vector<1x256xf32>
    %76 = arith.mulf %74, %75 : vector<1x256xf32>
    %77 = math.floor %76 : vector<1x256xf32>
    %cst_42 = arith.constant 1.800000e+01 : f32
    %78 = vector.broadcast %cst_42 : f32 to vector<1x256xf32>
    %79 = arith.mulf %77, %78 : vector<1x256xf32>
    %80 = arith.subf %72, %79 : vector<1x256xf32>
    %cst_43 = arith.constant 1.600000e+01 : f32
    %81 = vector.broadcast %cst_43 : f32 to vector<1x256xf32>
    %82 = arith.cmpf olt, %80, %81 : vector<1x256xf32>
    %c288_i32 = arith.constant 288 : i32
    %83 = vector.broadcast %c288_i32 : i32 to vector<1x256xi32>
    %84 = arith.cmpi slt, %63, %83 : vector<1x256xi32>
    %85 = arith.andi %82, %84 : vector<1x256xi1>
    %cst_44 = arith.constant 0.000000e+00 : f32
    %86 = vector.shape_cast %85 : vector<1x256xi1> to vector<1x256xi1>
    %87 = vector.broadcast %86 : vector<1x256xi1> to vector<8x256xi1>
    %88 = vector.broadcast %cst_44 : f32 to vector<8x256xf32>
    %89 = arith.select %87, %53, %88 : vector<8x256xi1>, vector<8x256xf32>
    %c0_45 = arith.constant 0 : index
    %c0_46 = arith.constant 0 : index
    %c0_47 = arith.constant 0 : index
    %c0_48 = arith.constant 0 : index
    %90 = vector.load %arg7[%c0_45, %c0_46, %c0_47, %c0_48] : memref<1x1x8x1xf32, #tpu.memory_space<vmem>>, vector<1x1x8x1xf32>
    %91 = vector.shape_cast %90 : vector<1x1x8x1xf32> to vector<8x1xf32>
    %cst_49 = arith.constant dense<0.000000e+00> : vector<8xf32>
    %92 = vector.multi_reduction <add>, %89, %cst_49 [1] : vector<8x256xf32> to vector<8xf32>
    %93 = vector.shape_cast %92 : vector<8xf32> to vector<8x1xf32>
    %94 = arith.addf %91, %93 : vector<8x1xf32>
    %c0_50 = arith.constant 0 : index
    %c0_51 = arith.constant 0 : index
    %c0_52 = arith.constant 0 : index
    %c0_53 = arith.constant 0 : index
    %95 = vector.load %arg7[%c0_50, %c0_51, %c0_52, %c0_53] : memref<1x1x8x1xf32, #tpu.memory_space<vmem>>, vector<1x1x8x1xf32>
    %96 = vector.shape_cast %95 : vector<1x1x8x1xf32> to vector<8x1xf32>
    %97 = vector.shape_cast %94 : vector<8x1xf32> to vector<1x1x8x1xf32>
    tpu.vector_store %arg7[%c0_50, %c0_51, %c0_52, %c0_53], %97 {strides = array<i32>} : memref<1x1x8x1xf32, #tpu.memory_space<vmem>>, vector<1x1x8x1xf32>,
    %c0_54 = arith.constant 0 : index
    %c0_55 = arith.constant 0 : index
    %c0_56 = arith.constant 0 : index
    %c0_57 = arith.constant 0 : index
    %98 = vector.load %arg8[%c0_54, %c0_55, %c0_56, %c0_57] : memref<1x1x8x1xf32, #tpu.memory_space<vmem>>, vector<1x1x8x1xf32>
    %99 = vector.shape_cast %98 : vector<1x1x8x1xf32> to vector<8x1xf32>
    %100 = arith.mulf %89, %89 : vector<8x256xf32>
    %cst_58 = arith.constant dense<0.000000e+00> : vector<8xf32>
    %101 = vector.multi_reduction <add>, %100, %cst_58 [1] : vector<8x256xf32> to vector<8xf32>
    %102 = vector.shape_cast %101 : vector<8xf32> to vector<8x1xf32>
    %103 = arith.addf %99, %102 : vector<8x1xf32>
    %c0_59 = arith.constant 0 : index
    %c0_60 = arith.constant 0 : index
    %c0_61 = arith.constant 0 : index
    %c0_62 = arith.constant 0 : index
    %104 = vector.load %arg8[%c0_59, %c0_60, %c0_61, %c0_62] : memref<1x1x8x1xf32, #tpu.memory_space<vmem>>, vector<1x1x8x1xf32>
    %105 = vector.shape_cast %104 : vector<1x1x8x1xf32> to vector<8x1xf32>
    %106 = vector.shape_cast %103 : vector<8x1xf32> to vector<1x1x8x1xf32>
    tpu.vector_store %arg8[%c0_59, %c0_60, %c0_61, %c0_62], %106 {strides = array<i32>} : memref<1x1x8x1xf32, #tpu.memory_space<vmem>>, vector<1x1x8x1xf32>,
    return
  }
  func.func @transform_0(%arg0: i32, %arg1: i32, %arg2: i32) -> (i32, i32, i32) {
    %c1_i32 = arith.constant 1 : i32
    %0 = arith.muli %arg1, %c1_i32 : i32
    %1 = arith.addi %0, %arg2 : i32
    %c0_i32 = arith.constant 0 : i32
    %c0_i32_0 = arith.constant 0 : i32
    return %arg0, %c0_i32, %1 : i32, i32, i32
  }
  func.func @transform_1(%arg0: i32, %arg1: i32, %arg2: i32) -> (i32, i32, i32) {
    %c1_i32 = arith.constant 1 : i32
    %0 = arith.muli %arg1, %c1_i32 : i32
    %1 = arith.addi %0, %arg2 : i32
    %c1_i32_0 = arith.constant 1 : i32
    %2 = arith.addi %1, %c1_i32_0 : i32
    %c2_i32 = arith.constant 2 : i32
    %3 = arith.muli %2, %c2_i32 : i32
    %c0_i32 = arith.constant 0 : i32
    %c0_i32_1 = arith.constant 0 : i32
    return %arg0, %c0_i32, %3 : i32, i32, i32
  }
  func.func @transform_2(%arg0: i32, %arg1: i32, %arg2: i32) -> (i32, i32, i32) {
    %c0_i32 = arith.constant 0 : i32
    %c0_i32_0 = arith.constant 0 : i32
    %c0_i32_1 = arith.constant 0 : i32
    %c0_i32_2 = arith.constant 0 : i32
    return %c0_i32, %c0_i32_0, %c0_i32_1 : i32, i32, i32
  }
  func.func @transform_3(%arg0: i32, %arg1: i32, %arg2: i32) -> (i32, i32, i32) {
    %c1_i32 = arith.constant 1 : i32
    %0 = arith.muli %arg1, %c1_i32 : i32
    %1 = arith.addi %0, %arg2 : i32
    %c0_i32 = arith.constant 0 : i32
    %c0_i32_0 = arith.constant 0 : i32
    return %arg0, %c0_i32, %1 : i32, i32, i32
  }
  func.func @transform_4(%arg0: i32, %arg1: i32, %arg2: i32) -> (i32, i32, i32, i32) {
    %c0_i32 = arith.constant 0 : i32
    %c0_i32_0 = arith.constant 0 : i32
    %c0_i32_1 = arith.constant 0 : i32
    return %arg0, %arg1, %c0_i32, %c0_i32_0 : i32, i32, i32, i32
  }
  func.func @transform_5(%arg0: i32, %arg1: i32, %arg2: i32) -> (i32, i32, i32, i32) {
    %c0_i32 = arith.constant 0 : i32
    %c0_i32_0 = arith.constant 0 : i32
    %c0_i32_1 = arith.constant 0 : i32
    return %arg0, %arg1, %c0_i32, %c0_i32_0 : i32, i32, i32, i32
  }
}

</mosaic_0001>

<llo_original>
// kernel: tpu_custom_call.1
$region0: #{tpu_custom_call.1}
  #allocation0 [shape = 'u32[]', space=smem, size = 0x4, offset = 0x4, fixed_abs, tag = 'smem constant byte address 0x4 - core index']
  #allocation1 [shape = 'u32[72,128]{1,0:T(1,128)}', space=vmem, size = 0x9000, scoped, tag = 'internal scratch']
  %s0 = inlined_call_operand.vmem [shape: bf16[2,4,640], index: 0, kind: input, shape index: {}]
  %s1 = inlined_call_operand.vmem [shape: bf16[2,4,640], index: 1, kind: input, shape index: {}]
  %s2 = inlined_call_operand.vmem [shape: bf16[9,8,4], index: 2, kind: input, shape index: {}]
  %s3 = inlined_call_operand.hbm [shape: bf16[2,8,288], index: 3, kind: output, shape index: {0}]
  %s4 = inlined_call_operand.vmem [shape: f32[2,2,8,1], index: 4, kind: output, shape index: {1}]
  %s5 = inlined_call_operand.vmem [shape: f32[2,2,8,1], index: 5, kind: output, shape index: {2}]
  %6 = xla_tuple %s3, %s4, %s5
  %s7 = sld [smem:[#allocation0]]
  $region65: #{tpu_custom_call.1} parent=0
    _
  %s9 = ssub.s32 1, %s7
  %s10 = scalar_select 0, %s9, %s7
  $region1: #{tpu_custom_call.1} parent=0
    #allocation2 [shape = 'u8[8192]{0}', space=vmem, size = 0x2000, scoped, tag = 'output window, operand 0']
    #allocation3 [shape = 's32[2]{0}', space=sflag, size = 0x8, scoped, tag = 'scoped memory for tpu_custom_call.1']
    %11 = vsyncpa [#allocation3], 0
    %s12 = scalar_lea.sflag [#allocation3], 1
    %13 = vsyncpa %s12, 0
    loop: start=0, step=1, limit=6
    $region2: #{tpu_custom_call.1} parent=1 // loop_pre_header
      _
    $region3: #{tpu_custom_call.1} parent=1 // loop_header
      %s15 = sphi 0, %s19
      %p16 = scmp.ge.s32.totalorder %s15, 6
      %s22 = sphi 0, %s41
      %s23 = sphi 0, %s37
      %s24 = sphi 0, %s33
      %s25 = sphi 0, %s22
      %s26 = sphi 0, %s23
      %s27 = sphi 0, %s24
      %s28 = sphi 0, %s25
      %s29 = sphi 0, %s26
      %s30 = sphi 0, %s27
      %s48 = sphi 0, %s50
      %s51 = sphi 0, %s48
      %s52 = sphi 0, %s51
      %s68 = sphi 0, %s52
      %s82 = sphi 0, %s84
      %s85 = sphi 0, %s82
      %s86 = sphi 0, %s85
      %s102 = sphi 0, %s86
      %s106 = sphi 0, %s106
      %s108 = sphi 0, %s106
      %s109 = sphi 0, %s108
      %s123 = sphi 0, %s109
      %s133 = sphi 0, %s135
      %s136 = sphi 0, %s133
      %s137 = sphi 0, %s136
      %s153 = sphi 0, %s137
      %s161 = sphi 0, %s163
      %s164 = sphi 0, %s161
      %s165 = sphi 0, %s164
      %s181 = sphi 0, %s165
      %s189 = sphi 0, %s191
      %s192 = sphi 0, %s189
      %s193 = sphi 0, %s192
      %s209 = sphi 0, %s193
    $region4: #{tpu_custom_call.1} parent=1 // loop_header_branch
      %18 = sbr.rel (%p16) target = $region8
    $region5: #{tpu_custom_call.1} parent=1 // loop_body
      %s20 = ssub.s32 %s15, 1
      %s21 = ssub.s32 %s15, 2
      %s31 = sadd.s32 1, %s24
      %p32 = scmp.ge.s32.totalorder %s31, 1
      %s33 = scalar_select %p32, 0, %s31
      %s34 = sadd.s32 1, %s23
      %s35 = scalar_select %p32, %s34, %s23
      %p36 = scmp.ge.s32.totalorder %s35, 2
      %s37 = scalar_select %p36, 0, %s35
      %s38 = sadd.s32 1, %s22
      %s39 = scalar_select %p36, %s38, %s22
      %p40 = scmp.ge.s32.totalorder %s39, 2
      %s41 = scalar_select %p40, 0, %s39
      %s42 = sadd.s32 %s23, %s24
      %s43 = sadd.s32 %s37, %s33
      %s44 = ssub.s32 %s22, %s41
      %s45 = ssub.s32 %s42, %s43
      %s46 = sor.u32 %s44, %s45
      %p47 = scmp.eq.s32.totalorder %s46, 0
      %s49 = sadd.s32 %s48, 1
      %s50 = scalar_select %p47, %s48, %s49
      %p53 = pneg %p47
      %p54 = scmp.eq.s32.totalorder %s15, 3
      %p55 = por %p53, %p54
      %p56 = scmp.ne.s32.totalorder %s48, %s51
      %p57 = scmp.eq.s32.totalorder %s15, 0
      %p58 = por %p56, %p57
      %p59 = scmp.ne.s32.totalorder %s48, %s51
      %p60 = scmp.eq.s32.totalorder %s20, 3
      %p61 = por %p59, %p60
      %p62 = scmp.ne.s32.totalorder %s51, %s52
      %p63 = scmp.eq.s32.totalorder %s20, 0
      %p64 = por %p62, %p63
      %p65 = scmp.ne.s32.totalorder %s51, %s52
      %p66 = scmp.eq.s32.totalorder %s21, 3
      %p67 = por %p65, %p66
      %p69 = scmp.ne.s32.totalorder %s52, %s68
      %p70 = scmp.eq.s32.totalorder %s21, 0
      %p71 = por %p69, %p70
      %s72 = sadd.s32 %s23, %s24
      %s73 = sadd.s32 %s72, 1
      %s74 = smul.u32 %s73, 2
      %s75 = sadd.s32 %s37, %s33
      %s76 = sadd.s32 %s75, 1
      %s77 = smul.u32 %s76, 2
      %s78 = ssub.s32 %s22, %s41
      %s79 = ssub.s32 %s74, %s77
      %s80 = sor.u32 %s78, %s79
      %p81 = scmp.eq.s32.totalorder %s80, 0
      %s83 = sadd.s32 %s82, 1
      %s84 = scalar_select %p81, %s82, %s83
      %p87 = pneg %p81
      %p88 = scmp.eq.s32.totalorder %s15, 3
      %p89 = por %p87, %p88
      %p90 = scmp.ne.s32.totalorder %s82, %s85
      %p91 = scmp.eq.s32.totalorder %s15, 0
      %p92 = por %p90, %p91
      %p93 = scmp.ne.s32.totalorder %s82, %s85
      %p94 = scmp.eq.s32.totalorder %s20, 3
      %p95 = por %p93, %p94
      %p96 = scmp.ne.s32.totalorder %s85, %s86
      %p97 = scmp.eq.s32.totalorder %s20, 0
      %p98 = por %p96, %p97
      %p99 = scmp.ne.s32.totalorder %s85, %s86
      %p100 = scmp.eq.s32.totalorder %s21, 3
      %p101 = por %p99, %p100
      %p103 = scmp.ne.s32.totalorder %s86, %s102
      %p104 = scmp.eq.s32.totalorder %s21, 0
      %p105 = por %p103, %p104
      %s107 = sadd.s32 %s106, 1
      %p110 = scmp.eq.s32.totalorder %s15, 3
      %p111 = scmp.ne.s32.totalorder %s106, %s108
      %p112 = scmp.eq.s32.totalorder %s15, 0
      %p113 = por %p111, %p112
      %p114 = scmp.ne.s32.totalorder %s106, %s108
      %p115 = scmp.eq.s32.totalorder %s20, 3
      %p116 = por %p114, %p115
      %p117 = scmp.ne.s32.totalorder %s108, %s109
      %p118 = scmp.eq.s32.totalorder %s20, 0
      %p119 = por %p117, %p118
      %p120 = scmp.ne.s32.totalorder %s108, %s109
      %p121 = scmp.eq.s32.totalorder %s21, 3
      %p122 = por %p120, %p121
      %p124 = scmp.ne.s32.totalorder %s109, %s123
      %p125 = scmp.eq.s32.totalorder %s21, 0
      %p126 = por %p124, %p125
      %s127 = sadd.s32 %s23, %s24
      %s128 = sadd.s32 %s37, %s33
      %s129 = ssub.s32 %s22, %s41
      %s130 = ssub.s32 %s127, %s128
      %s131 = sor.u32 %s129, %s130
      %p132 = scmp.eq.s32.totalorder %s131, 0
      %s134 = sadd.s32 %s133, 1
      %s135 = scalar_select %p132, %s133, %s134
      %p138 = pneg %p132
      %p139 = scmp.eq.s32.totalorder %s15, 3
      %p140 = por %p138, %p139
      %p141 = scmp.ne.s32.totalorder %s133, %s136
      %p142 = scmp.eq.s32.totalorder %s15, 0
      %p143 = por %p141, %p142
      %p144 = scmp.ne.s32.totalorder %s133, %s136
      %p145 = scmp.eq.s32.totalorder %s20, 3
      %p146 = por %p144, %p145
      %p147 = scmp.ne.s32.totalorder %s136, %s137
      %p148 = scmp.eq.s32.totalorder %s20, 0
      %p149 = por %p147, %p148
      %p150 = scmp.ne.s32.totalorder %s136, %s137
      %p151 = scmp.eq.s32.totalorder %s21, 3
      %p152 = por %p150, %p151
      %p154 = scmp.ne.s32.totalorder %s137, %s153
      %p155 = scmp.eq.s32.totalorder %s21, 0
      %p156 = por %p154, %p155
      %s157 = ssub.s32 %s22, %s41
      %s158 = ssub.s32 %s23, %s37
      %s159 = sor.u32 %s157, %s158
      %p160 = scmp.eq.s32.totalorder %s159, 0
      %s162 = sadd.s32 %s161, 1
      %s163 = scalar_select %p160, %s161, %s162
      %p166 = pneg %p160
      %p167 = scmp.eq.s32.totalorder %s15, 3
      %p168 = por %p166, %p167
      %p169 = scmp.ne.s32.totalorder %s161, %s164
      %p170 = scmp.eq.s32.totalorder %s15, 0
      %p171 = por %p169, %p170
      %p172 = scmp.ne.s32.totalorder %s161, %s164
      %p173 = scmp.eq.s32.totalorder %s20, 3
      %p174 = por %p172, %p173
      %p175 = scmp.ne.s32.totalorder %s164, %s165
      %p176 = scmp.eq.s32.totalorder %s20, 0
      %p177 = por %p175, %p176
      %p178 = scmp.ne.s32.totalorder %s164, %s165
      %p179 = scmp.eq.s32.totalorder %s21, 3
      %p180 = por %p178, %p179
      %p182 = scmp.ne.s32.totalorder %s165, %s181
      %p183 = scmp.eq.s32.totalorder %s21, 0
      %p184 = por %p182, %p183
      %s185 = ssub.s32 %s22, %s41
      %s186 = ssub.s32 %s23, %s37
      %s187 = sor.u32 %s185, %s186
      %p188 = scmp.eq.s32.totalorder %s187, 0
      %s190 = sadd.s32 %s189, 1
      %s191 = scalar_select %p188, %s189, %s190
      %p194 = pneg %p188
      %p195 = scmp.eq.s32.totalorder %s15, 3
      %p196 = por %p194, %p195
      %p197 = scmp.ne.s32.totalorder %s189, %s192
      %p198 = scmp.eq.s32.totalorder %s15, 0
      %p199 = por %p197, %p198
      %p200 = scmp.ne.s32.totalorder %s189, %s192
      %p201 = scmp.eq.s32.totalorder %s20, 3
      %p202 = por %p200, %p201
      %p203 = scmp.ne.s32.totalorder %s192, %s193
      %p204 = scmp.eq.s32.totalorder %s20, 0
      %p205 = por %p203, %p204
      %p206 = scmp.ne.s32.totalorder %s192, %s193
      %p207 = scmp.eq.s32.totalorder %s21, 3
      %p208 = por %p206, %p207
      %p210 = scmp.ne.s32.totalorder %s193, %s209
      %p211 = scmp.eq.s32.totalorder %s21, 0
      %p212 = por %p210, %p211
      %p213 = scmp.le.s32.totalorder 1, %s15
      %p214 = scmp.lt.s32.totalorder %s15, 5
      %p215 = pnand %p213, %p214
      %p216 = pneg %p215
      // Predicated region
      $region9: #{tpu_custom_call.1} parent=5 // pred_check
        _
      $region10: #{tpu_custom_call.1} parent=5 // pred_check_branch
        %218 = sbr.rel (%p215) target = $region12
      $region11: #{tpu_custom_call.1} parent=5 // pred_region
        %s219 = ssub.s32 %s15, 1
        // Predicated region
        $region13: #{tpu_custom_call.1} parent=11 // pred_check
          %p220 = pneg %p119
        $region14: #{tpu_custom_call.1} parent=11 // pred_check_branch
          %222 = sbr.rel (%p220) target = $region16
        $region15: #{tpu_custom_call.1} parent=11 // pred_region
          _
        $region16: #{tpu_custom_call.1} parent=11 // pred_fallthru
          _
      $region12: #{tpu_custom_call.1} parent=5 // pred_fallthru
        _
      %p223 = scmp.lt.s32.totalorder %s15, 4
      // Predicated region
      $region17: #{tpu_custom_call.1} parent=5 // pred_check
        %p224 = pneg %p223
      $region18: #{tpu_custom_call.1} parent=5 // pred_check_branch
        %226 = sbr.rel (%p224) target = $region20
      $region19: #{tpu_custom_call.1} parent=5 // pred_region
        // Predicated region
        $region21: #{tpu_custom_call.1} parent=19 // pred_check
          %p227 = pneg %p58
        $region22: #{tpu_custom_call.1} parent=19 // pred_check_branch
          %229 = sbr.rel (%p227) target = $region24
        $region23: #{tpu_custom_call.1} parent=19 // pred_region
          %s230 = sadd.s32 %s23, %s24
          %s231 = smul.u32 2, %s230
          %s232 = ssub.s32 5, %s231
          %p233 = scmp.lt.s32.totalorder %s232, 2
          %s234 = scalar_select %p233, %s232, 2
          %s235 = smul.u32 2, %s234
          %p236 = scmp.lt.s32.totalorder %s22, 1
          %s237 = scalar_select %p236, %s22, 1
          %p238 = scmp.lt.s32.totalorder %s231, 4
          %s239 = scalar_select %p238, %s231, 4
          %s240 = smul.addr %s237, 5
          %s241 = sadd.s32 %s239, %s240
          %s242 = smul.addr %s241, 2
          %s243 = scalar_lea.vmem %s0, %s242
          %s244 = sadd.s32 %s23, %s24
          %s245 = smul.u32 2, %s244
          %s246 = ssub.s32 5, %s245
          %p247 = scmp.lt.s32.totalorder %s246, 2
          %s248 = scalar_select %p247, %s246, 2
          %s249 = smul.u32 2, %s248
        $region24: #{tpu_custom_call.1} parent=19 // pred_fallthru
          _
        // Predicated region
        $region25: #{tpu_custom_call.1} parent=19 // pred_check
          %p250 = pneg %p92
        $region26: #{tpu_custom_call.1} parent=19 // pred_check_branch
          %252 = sbr.rel (%p250) target = $region28
        $region27: #{tpu_custom_call.1} parent=19 // pred_region
          %s253 = sadd.s32 %s23, %s24
          %s254 = sadd.s32 %s253, 1
          %s255 = smul.u32 %s254, 2
          %p256 = scmp.lt.s32.totalorder %s22, 1
          %s257 = scalar_select %p256, %s22, 1
          %p258 = scmp.lt.s32.totalorder %s255, 4
          %s259 = scalar_select %p258, %s255, 4
          %s260 = smul.addr %s257, 5
          %s261 = sadd.s32 %s259, %s260
          %s262 = smul.addr %s261, 2
          %s263 = scalar_lea.vmem %s1, %s262
          %s264 = sadd.s32 %s23, %s24
          %s265 = sadd.s32 %s264, 1
          %s266 = smul.u32 %s265, 2
        $region28: #{tpu_custom_call.1} parent=19 // pred_fallthru
          _
      $region20: #{tpu_custom_call.1} parent=5 // pred_fallthru
        _
      %p267 = scmp.le.s32.totalorder 1, %s15
      %p268 = scmp.lt.s32.totalorder %s15, 5
      %p269 = pnand %p267, %p268
      %p270 = pneg %p269
      // Predicated region
      $region29: #{tpu_custom_call.1} parent=5 // pred_check
        _
      $region30: #{tpu_custom_call.1} parent=5 // pred_check_branch
        %272 = sbr.rel (%p269) target = $region32
      $region31: #{tpu_custom_call.1} parent=5 // pred_region
        %s273 = ssub.s32 %s15, 1
        %s274 = sadd.s32 %s26, %s27
        %s275 = smul.u32 2, %s274
        %s276 = ssub.s32 5, %s275
        %p277 = scmp.lt.s32.totalorder %s276, 2
        %s278 = scalar_select %p277, %s276, 2
        %s279 = smul.u32 2, %s278
        %p280 = scmp.lt.s32.totalorder %s25, 1
        %s281 = scalar_select %p280, %s25, 1
        %p282 = scmp.lt.s32.totalorder %s275, 4
        %s283 = scalar_select %p282, %s275, 4
        %s284 = smul.addr %s281, 5
        %s285 = sadd.s32 %s283, %s284
        %s286 = smul.addr %s285, 2
        %s287 = scalar_lea.vmem %s0, %s286
        %p288 = pneg %p64
        %p289 = pneg %p61
        %s290 = sadd.s32 %s26, %s27
        %s291 = sadd.s32 %s290, 1
        %s292 = smul.u32 %s291, 2
        %p293 = scmp.lt.s32.totalorder %s25, 1
        %s294 = scalar_select %p293, %s25, 1
        %p295 = scmp.lt.s32.totalorder %s292, 4
        %s296 = scalar_select %p295, %s292, 4
        %s297 = smul.addr %s294, 5
        %s298 = sadd.s32 %s296, %s297
        %s299 = smul.addr %s298, 2
        %s300 = scalar_lea.vmem %s1, %s299
        %p301 = pneg %p98
        %p302 = pneg %p95
        %p303 = pneg %p119
        %p304 = pneg %p116
        %p305 = pneg %p149
        %p306 = pneg %p146
        %s307 = sand.u32 %s136, 1
        %s308 = scalar_lea.sflag [#allocation3], %s307
        %s309 = sand.u32 %s136, 1
        %s310 = smul.addr %s309, 8
        %s311 = scalar_lea.vmem [#allocation2], %s310
        %p312 = pneg %p177
        %p313 = pneg %p174
        %p314 = scmp.lt.s32.totalorder %s25, 1
        %s315 = scalar_select %p314, %s25, 1
        %p316 = scmp.lt.s32.totalorder %s26, 1
        %s317 = scalar_select %p316, %s26, 1
        %s318 = smul.addr %s315, 2
        %s319 = sadd.s32 %s317, %s318
        %s320 = smul.addr %s319, 8
        %s321 = scalar_lea.vmem %s4, %s320
        %p322 = pneg %p205
        %p323 = pneg %p202
        %p324 = scmp.lt.s32.totalorder %s25, 1
        %s325 = scalar_select %p324, %s25, 1
        %p326 = scmp.lt.s32.totalorder %s26, 1
        %s327 = scalar_select %p326, %s26, 1
        %s328 = smul.addr %s325, 2
        %s329 = sadd.s32 %s327, %s328
        %s330 = smul.addr %s329, 8
        %s331 = scalar_lea.vmem %s5, %s330
        %s332 = sadd.s32 %s26, %s27
        %s333 = smul.u32 2, %s332
        %s334 = ssub.s32 5, %s333
        %p335 = scmp.lt.s32.totalorder %s334, 2
        %s336 = scalar_select %p335, %s334, 2
        %s337 = smul.u32 2, %s336
        %p338 = scmp.lt.s32.totalorder %s25, 1
        %s339 = scalar_select %p338, %s25, 1
        %p340 = scmp.lt.s32.totalorder %s333, 4
        %s341 = scalar_select %p340, %s333, 4
        %s342 = smul.addr %s339, 5
        %s343 = sadd.s32 %s341, %s342
        %s344 = smul.addr %s343, 2
        %s345 = scalar_lea.vmem %s0, %s344
        %s346 = sadd.s32 %s26, %s27
        %s347 = smul.u32 2, %s346
        %s348 = ssub.s32 5, %s347
        %p349 = scmp.lt.s32.totalorder %s348, 2
        %s350 = scalar_select %p349, %s348, 2
        %s351 = smul.u32 2, %s350
        %s352 = sadd.s32 %s26, %s27
        %s353 = sadd.s32 %s352, 1
        %s354 = smul.u32 %s353, 2
        %p355 = scmp.lt.s32.totalorder %s25, 1
        %s356 = scalar_select %p355, %s25, 1
        %p357 = scmp.lt.s32.totalorder %s354, 4
        %s358 = scalar_select %p357, %s354, 4
        %s359 = smul.addr %s356, 5
        %s360 = sadd.s32 %s358, %s359
        %s361 = smul.addr %s360, 2
        %s362 = scalar_lea.vmem %s1, %s361
        %s363 = sadd.s32 %s26, %s27
        %s364 = sadd.s32 %s363, 1
        %s365 = smul.u32 %s364, 2
        %s366 = sadd.s32 %s26, %s27
        %s367 = smul.u32 2, %s366
        %s368 = ssub.s32 3, %s367
        %p369 = scmp.lt.s32.totalorder %s368, 2
        %s370 = scalar_select %p369, %s368, 2
        %s371 = smul.u32 4, %s370
        %p372 = scmp.lt.s32.totalorder %s25, 1
        %s373 = scalar_select %p372, %s25, 1
        %p374 = scmp.lt.s32.totalorder %s26, 1
        %s375 = scalar_select %p374, %s26, 1
        %s376 = smul.addr %s373, 2
        %s377 = sadd.s32 %s375, %s376
        %s378 = smul.addr %s377, 8
        %s379 = scalar_lea.vmem %s4, %s378
        %p380 = scmp.lt.s32.totalorder %s25, 1
        %s381 = scalar_select %p380, %s25, 1
        %p382 = scmp.lt.s32.totalorder %s26, 1
        %s383 = scalar_select %p382, %s26, 1
        %s384 = smul.addr %s381, 2
        %s385 = sadd.s32 %s383, %s384
        %s386 = smul.addr %s385, 8
        %s387 = scalar_lea.vmem %s5, %s386
        %p389 = scmp.eq.s32.totalorder %s27, 0
        // Predicated region
        $region33: #{tpu_custom_call.1} parent=31 // pred_check
          %p390 = pneg %p389
        $region34: #{tpu_custom_call.1} parent=31 // pred_check_branch
          %392 = sbr.rel (%p390) target = $region36
        $region35: #{tpu_custom_call.1} parent=31 // pred_region
          %vm393 = vcmask 7168
          %394 = vst.msk [vmem:[%s379] sm:$0xff] %vm393, 0.0
          %395 = vst.msk [vmem:[%s387] sm:$0xff] %vm393, 0.0
        $region36: #{tpu_custom_call.1} parent=31 // pred_fallthru
          _
        %v396 = vld [vmem:[%s345] sm:$0xf]
        %v397 = vld [vmem:[%s362] sm:$0x3]
        %399 = vst [vmem:[#allocation1] ss:$4 sm:$0xff] %v396
        %v400 = vld.sshfl [vmem:[#allocation1] sm:$0xff pattern:$0x73625140]
        %v402 = vld.sshfl [vmem:[#allocation1 + $0x8] sm:$0xff pattern:$0x73625140]
        %v404 = vld [vmem:[%s2] sm:$0xf]
        %s405 = scalar_lea.vmem %s2, 4
        %v406 = vld [vmem:[%s405] sm:$0xf]
        %408 = vrot.lane.b32.xlu0 %v400, 127
        %v409 = vpop.permute.xlu0 %408
        %410 = vrot.lane.b32.xlu0 %v402, 127
        %v411 = vpop.permute.xlu0 %410
        %412 = vrot.lane.b32.xlu0 %v397, 127
        %v413 = vpop.permute.xlu0 %412
        %vm414 = vcmask 1039360
        %v415 = vsel %vm414, %v409, %v411
        %v416 = vsel %vm414, %v411, %v413
        %vm417 = vcmask 31744
        %v419 = vsel %vm417, %v406, 0
        %vm421 = vcmask 1041408
        %v423 = vsel %vm421, %v415, 0
        %v426 = vsel %vm421, %v416, 0
        %428 = vmatpush.bf16.msra.mxu0 0
        %429 = vmatpush.bf16.msra.mxu0 0
        %430 = vmatpush.bf16.msra.mxu0 0
        %431 = vmatpush.bf16.msra.mxu0 0
        %432 = vmatpush.bf16.msra.mxu0 0
        %433 = vmatpush.bf16.msra.mxu0 0
        %434 = vmatpush.bf16.msra.mxu0 0
        %435 = vmatpush.bf16.msra.mxu0 %v423
        %436 = vmatmul.bf16.gmra.mxu0 %v419
        %v437 = vpop.f32.mrf.mxu0
        %v438 = vadd.f32 0.0, %v437
        %v439 = vpop.f32.mrf.mxu0
        %440 = vdwg.mxu0
        %441 = vmatpush.bf16.msra.mxu0 0
        %442 = vmatpush.bf16.msra.mxu0 0
        %443 = vmatpush.bf16.msra.mxu0 0
        %444 = vmatpush.bf16.msra.mxu0 0
        %445 = vmatpush.bf16.msra.mxu0 0
        %446 = vmatpush.bf16.msra.mxu0 0
        %447 = vmatpush.bf16.msra.mxu0 0
        %448 = vmatpush.bf16.msra.mxu0 %v426
        %449 = vmatmul.bf16.gmra.mxu0 %v419
        %v450 = vpop.f32.mrf.mxu0
        %v451 = vadd.f32 0.0, %v450
        %v452 = vpop.f32.mrf.mxu0
        %453 = vdwg.mxu0
        %v455 = vsel %vm417, %v404, 0
        %v457 = vsel %vm421, %v400, 0
        %v459 = vsel %vm421, %v402, 0
        %461 = vmatpush.bf16.msra.mxu0 0
        %462 = vmatpush.bf16.msra.mxu0 0
        %463 = vmatpush.bf16.msra.mxu0 0
        %464 = vmatpush.bf16.msra.mxu0 0
        %465 = vmatpush.bf16.msra.mxu0 0
        %466 = vmatpush.bf16.msra.mxu0 0
        %467 = vmatpush.bf16.msra.mxu0 0
        %468 = vmatpush.bf16.msra.mxu0 %v457
        %469 = vmatmul.bf16.gmra.mxu0 %v455
        %v470 = vpop.f32.mrf.mxu0
        %v471 = vadd.f32 %v438, %v470
        %v472 = vpop.f32.mrf.mxu0
        %473 = vdwg.mxu0
        %474 = vmatpush.bf16.msra.mxu0 0
        %475 = vmatpush.bf16.msra.mxu0 0
        %476 = vmatpush.bf16.msra.mxu0 0
        %477 = vmatpush.bf16.msra.mxu0 0
        %478 = vmatpush.bf16.msra.mxu0 0
        %479 = vmatpush.bf16.msra.mxu0 0
        %480 = vmatpush.bf16.msra.mxu0 0
        %481 = vmatpush.bf16.msra.mxu0 %v459
        %482 = vmatmul.bf16.gmra.mxu0 %v455
        %v483 = vpop.f32.mrf.mxu0
        %v484 = vadd.f32 %v451, %v483
        %v485 = vpop.f32.mrf.mxu0
        %486 = vdwg.mxu0
        %s487 = scalar_lea.vmem %s2, 8
        %v488 = vld [vmem:[%s487] sm:$0xf]
        %489 = vrot.lane.b32.xlu0 %v400, 126
        %v490 = vpop.permute.xlu0 %489
        %491 = vrot.lane.b32.xlu0 %v402, 126
        %v492 = vpop.permute.xlu0 %491
        %493 = vrot.lane.b32.xlu0 %v397, 126
        %v494 = vpop.permute.xlu0 %493
        %vm495 = vcmask 1031168
        %v496 = vsel %vm495, %v490, %v492
        %v497 = vsel %vm495, %v492, %v494
        %v499 = vsel %vm417, %v488, 0
        %v502 = vsel %vm421, %v496, 0
        %v505 = vsel %vm421, %v497, 0
        %507 = vmatpush.bf16.msra.mxu0 0
        %508 = vmatpush.bf16.msra.mxu0 0
        %509 = vmatpush.bf16.msra.mxu0 0
        %510 = vmatpush.bf16.msra.mxu0 0
        %511 = vmatpush.bf16.msra.mxu0 0
        %512 = vmatpush.bf16.msra.mxu0 0
        %513 = vmatpush.bf16.msra.mxu0 0
        %514 = vmatpush.bf16.msra.mxu0 %v502
        %515 = vmatmul.bf16.gmra.mxu0 %v499
        %v516 = vpop.f32.mrf.mxu0
        %v517 = vadd.f32 0.0, %v516
        %v518 = vpop.f32.mrf.mxu0
        %519 = vdwg.mxu0
        %520 = vmatpush.bf16.msra.mxu0 0
        %521 = vmatpush.bf16.msra.mxu0 0
        %522 = vmatpush.bf16.msra.mxu0 0
        %523 = vmatpush.bf16.msra.mxu0 0
        %524 = vmatpush.bf16.msra.mxu0 0
        %525 = vmatpush.bf16.msra.mxu0 0
        %526 = vmatpush.bf16.msra.mxu0 0
        %527 = vmatpush.bf16.msra.mxu0 %v505
        %528 = vmatmul.bf16.gmra.mxu0 %v499
        %v529 = vpop.f32.mrf.mxu0
        %v530 = vadd.f32 0.0, %v529
        %v531 = vpop.f32.mrf.mxu0
        %532 = vdwg.mxu0
        %v533 = vadd.f32 %v471, %v517
        %v534 = vadd.f32 %v484, %v530
        %s535 = scalar_lea.vmem %s2, 12
        %v536 = vld [vmem:[%s535] sm:$0xf]
        %537 = vrot.lane.b32.xlu0 %v400, 110
        %v538 = vpop.permute.xlu0 %537
        %539 = vrot.lane.b32.xlu0 %v402, 110
        %v540 = vpop.permute.xlu0 %539
        %541 = vrot.lane.b32.xlu0 %v397, 110
        %v542 = vpop.permute.xlu0 %541
        %vm543 = vcmask 900096
        %v544 = vsel %vm543, %v538, %v540
        %v545 = vsel %vm543, %v540, %v542
        %v547 = vsel %vm417, %v536, 0
        %v550 = vsel %vm421, %v544, 0
        %v553 = vsel %vm421, %v545, 0
        %555 = vmatpush.bf16.msra.mxu0 0
        %556 = vmatpush.bf16.msra.mxu0 0
        %557 = vmatpush.bf16.msra.mxu0 0
        %558 = vmatpush.bf16.msra.mxu0 0
        %559 = vmatpush.bf16.msra.mxu0 0
        %560 = vmatpush.bf16.msra.mxu0 0
        %561 = vmatpush.bf16.msra.mxu0 0
        %562 = vmatpush.bf16.msra.mxu0 %v550
        %563 = vmatmul.bf16.gmra.mxu0 %v547
        %v564 = vpop.f32.mrf.mxu0
        %v565 = vadd.f32 0.0, %v564
        %v566 = vpop.f32.mrf.mxu0
        %567 = vdwg.mxu0
        %568 = vmatpush.bf16.msra.mxu0 0
        %569 = vmatpush.bf16.msra.mxu0 0
        %570 = vmatpush.bf16.msra.mxu0 0
        %571 = vmatpush.bf16.msra.mxu0 0
        %572 = vmatpush.bf16.msra.mxu0 0
        %573 = vmatpush.bf16.msra.mxu0 0
        %574 = vmatpush.bf16.msra.mxu0 0
        %575 = vmatpush.bf16.msra.mxu0 %v553
        %576 = vmatmul.bf16.gmra.mxu0 %v547
        %v577 = vpop.f32.mrf.mxu0
        %v578 = vadd.f32 0.0, %v577
        %v579 = vpop.f32.mrf.mxu0
        %580 = vdwg.mxu0
        %v581 = vadd.f32 %v533, %v565
        %v582 = vadd.f32 %v534, %v578
        %s583 = scalar_lea.vmem %s2, 16
        %v584 = vld [vmem:[%s583] sm:$0xf]
        %585 = vrot.lane.b32.xlu0 %v400, 109
        %v586 = vpop.permute.xlu0 %585
        %587 = vrot.lane.b32.xlu0 %v402, 109
        %v588 = vpop.permute.xlu0 %587
        %589 = vrot.lane.b32.xlu0 %v397, 109
        %v590 = vpop.permute.xlu0 %589
        %vm591 = vcmask 891904
        %v592 = vsel %vm591, %v586, %v588
        %v593 = vsel %vm591, %v588, %v590
        %v595 = vsel %vm417, %v584, 0
        %v598 = vsel %vm421, %v592, 0
        %v601 = vsel %vm421, %v593, 0
        %603 = vmatpush.bf16.msra.mxu0 0
        %604 = vmatpush.bf16.msra.mxu0 0
        %605 = vmatpush.bf16.msra.mxu0 0
        %606 = vmatpush.bf16.msra.mxu0 0
        %607 = vmatpush.bf16.msra.mxu0 0
        %608 = vmatpush.bf16.msra.mxu0 0
        %609 = vmatpush.bf16.msra.mxu0 0
        %610 = vmatpush.bf16.msra.mxu0 %v598
        %611 = vmatmul.bf16.gmra.mxu0 %v595
        %v612 = vpop.f32.mrf.mxu0
        %v613 = vadd.f32 0.0, %v612
        %v614 = vpop.f32.mrf.mxu0
        %615 = vdwg.mxu0
        %616 = vmatpush.bf16.msra.mxu0 0
        %617 = vmatpush.bf16.msra.mxu0 0
        %618 = vmatpush.bf16.msra.mxu0 0
        %619 = vmatpush.bf16.msra.mxu0 0
        %620 = vmatpush.bf16.msra.mxu0 0
        %621 = vmatpush.bf16.msra.mxu0 0
        %622 = vmatpush.bf16.msra.mxu0 0
        %623 = vmatpush.bf16.msra.mxu0 %v601
        %624 = vmatmul.bf16.gmra.mxu0 %v595
        %v625 = vpop.f32.mrf.mxu0
        %v626 = vadd.f32 0.0, %v625
        %v627 = vpop.f32.mrf.mxu0
        %628 = vdwg.mxu0
        %v629 = vadd.f32 %v581, %v613
        %v630 = vadd.f32 %v582, %v626
        %s631 = scalar_lea.vmem %s2, 20
        %v632 = vld [vmem:[%s631] sm:$0xf]
        %633 = vrot.lane.b32.xlu0 %v400, 108
        %v634 = vpop.permute.xlu0 %633
        %635 = vrot.lane.b32.xlu0 %v402, 108
        %v636 = vpop.permute.xlu0 %635
        %637 = vrot.lane.b32.xlu0 %v397, 108
        %v638 = vpop.permute.xlu0 %637
        %vm639 = vcmask 883712
        %v640 = vsel %vm639, %v634, %v636
        %v641 = vsel %vm639, %v636, %v638
        %v643 = vsel %vm417, %v632, 0
        %v646 = vsel %vm421, %v640, 0
        %v649 = vsel %vm421, %v641, 0
        %651 = vmatpush.bf16.msra.mxu0 0
        %652 = vmatpush.bf16.msra.mxu0 0
        %653 = vmatpush.bf16.msra.mxu0 0
        %654 = vmatpush.bf16.msra.mxu0 0
        %655 = vmatpush.bf16.msra.mxu0 0
        %656 = vmatpush.bf16.msra.mxu0 0
        %657 = vmatpush.bf16.msra.mxu0 0
        %658 = vmatpush.bf16.msra.mxu0 %v646
        %659 = vmatmul.bf16.gmra.mxu0 %v643
        %v660 = vpop.f32.mrf.mxu0
        %v661 = vadd.f32 0.0, %v660
        %v662 = vpop.f32.mrf.mxu0
        %663 = vdwg.mxu0
        %664 = vmatpush.bf16.msra.mxu0 0
        %665 = vmatpush.bf16.msra.mxu0 0
        %666 = vmatpush.bf16.msra.mxu0 0
        %667 = vmatpush.bf16.msra.mxu0 0
        %668 = vmatpush.bf16.msra.mxu0 0
        %669 = vmatpush.bf16.msra.mxu0 0
        %670 = vmatpush.bf16.msra.mxu0 0
        %671 = vmatpush.bf16.msra.mxu0 %v649
        %672 = vmatmul.bf16.gmra.mxu0 %v643
        %v673 = vpop.f32.mrf.mxu0
        %v674 = vadd.f32 0.0, %v673
        %v675 = vpop.f32.mrf.mxu0
        %676 = vdwg.mxu0
        %v677 = vadd.f32 %v629, %v661
        %v678 = vadd.f32 %v630, %v674
        %s679 = scalar_lea.vmem %s2, 24
        %v680 = vld [vmem:[%s679] sm:$0xf]
        %681 = vrot.lane.b32.xlu0 %v400, 92
        %v682 = vpop.permute.xlu0 %681
        %683 = vrot.lane.b32.xlu0 %v402, 92
        %v684 = vpop.permute.xlu0 %683
        %685 = vrot.lane.b32.xlu0 %v397, 92
        %v686 = vpop.permute.xlu0 %685
        %vm687 = vcmask 752640
        %v688 = vsel %vm687, %v682, %v684
        %v689 = vsel %vm687, %v684, %v686
        %v691 = vsel %vm417, %v680, 0
        %v694 = vsel %vm421, %v688, 0
        %v697 = vsel %vm421, %v689, 0
        %699 = vmatpush.bf16.msra.mxu0 0
        %700 = vmatpush.bf16.msra.mxu0 0
        %701 = vmatpush.bf16.msra.mxu0 0
        %702 = vmatpush.bf16.msra.mxu0 0
        %703 = vmatpush.bf16.msra.mxu0 0
        %704 = vmatpush.bf16.msra.mxu0 0
        %705 = vmatpush.bf16.msra.mxu0 0
        %706 = vmatpush.bf16.msra.mxu0 %v694
        %707 = vmatmul.bf16.gmra.mxu0 %v691
        %v708 = vpop.f32.mrf.mxu0
        %v709 = vadd.f32 0.0, %v708
        %v710 = vpop.f32.mrf.mxu0
        %711 = vdwg.mxu0
        %712 = vmatpush.bf16.msra.mxu0 0
        %713 = vmatpush.bf16.msra.mxu0 0
        %714 = vmatpush.bf16.msra.mxu0 0
        %715 = vmatpush.bf16.msra.mxu0 0
        %716 = vmatpush.bf16.msra.mxu0 0
        %717 = vmatpush.bf16.msra.mxu0 0
        %718 = vmatpush.bf16.msra.mxu0 0
        %719 = vmatpush.bf16.msra.mxu0 %v697
        %720 = vmatmul.bf16.gmra.mxu0 %v691
        %v721 = vpop.f32.mrf.mxu0
        %v722 = vadd.f32 0.0, %v721
        %v723 = vpop.f32.mrf.mxu0
        %724 = vdwg.mxu0
        %v725 = vadd.f32 %v677, %v709
        %v726 = vadd.f32 %v678, %v722
        %s727 = scalar_lea.vmem %s2, 28
        %v728 = vld [vmem:[%s727] sm:$0xf]
        %729 = vrot.lane.b32.xlu0 %v400, 91
        %v730 = vpop.permute.xlu0 %729
        %731 = vrot.lane.b32.xlu0 %v402, 91
        %v732 = vpop.permute.xlu0 %731
        %733 = vrot.lane.b32.xlu0 %v397, 91
        %v734 = vpop.permute.xlu0 %733
        %vm735 = vcmask 744448
        %v736 = vsel %vm735, %v730, %v732
        %v737 = vsel %vm735, %v732, %v734
        %v739 = vsel %vm417, %v728, 0
        %v742 = vsel %vm421, %v736, 0
        %v745 = vsel %vm421, %v737, 0
        %747 = vmatpush.bf16.msra.mxu0 0
        %748 = vmatpush.bf16.msra.mxu0 0
        %749 = vmatpush.bf16.msra.mxu0 0
        %750 = vmatpush.bf16.msra.mxu0 0
        %751 = vmatpush.bf16.msra.mxu0 0
        %752 = vmatpush.bf16.msra.mxu0 0
        %753 = vmatpush.bf16.msra.mxu0 0
        %754 = vmatpush.bf16.msra.mxu0 %v742
        %755 = vmatmul.bf16.gmra.mxu0 %v739
        %v756 = vpop.f32.mrf.mxu0
        %v757 = vadd.f32 0.0, %v756
        %v758 = vpop.f32.mrf.mxu0
        %759 = vdwg.mxu0
        %760 = vmatpush.bf16.msra.mxu0 0
        %761 = vmatpush.bf16.msra.mxu0 0
        %762 = vmatpush.bf16.msra.mxu0 0
        %763 = vmatpush.bf16.msra.mxu0 0
        %764 = vmatpush.bf16.msra.mxu0 0
        %765 = vmatpush.bf16.msra.mxu0 0
        %766 = vmatpush.bf16.msra.mxu0 0
        %767 = vmatpush.bf16.msra.mxu0 %v745
        %768 = vmatmul.bf16.gmra.mxu0 %v739
        %v769 = vpop.f32.mrf.mxu0
        %v770 = vadd.f32 0.0, %v769
        %v771 = vpop.f32.mrf.mxu0
        %772 = vdwg.mxu0
        %v773 = vadd.f32 %v725, %v757
        %v774 = vadd.f32 %v726, %v770
        %s775 = scalar_lea.vmem %s2, 32
        %v776 = vld [vmem:[%s775] sm:$0xf]
        %777 = vrot.lane.b32.xlu0 %v400, 90
        %v778 = vpop.permute.xlu0 %777
        %779 = vrot.lane.b32.xlu0 %v402, 90
        %v780 = vpop.permute.xlu0 %779
        %781 = vrot.lane.b32.xlu0 %v397, 90
        %v782 = vpop.permute.xlu0 %781
        %vm783 = vcmask 736256
        %v784 = vsel %vm783, %v778, %v780
        %v785 = vsel %vm783, %v780, %v782
        %v787 = vsel %vm417, %v776, 0
        %v790 = vsel %vm421, %v784, 0
        %v793 = vsel %vm421, %v785, 0
        %795 = vmatpush.bf16.msra.mxu0 0
        %796 = vmatpush.bf16.msra.mxu0 0
        %797 = vmatpush.bf16.msra.mxu0 0
        %798 = vmatpush.bf16.msra.mxu0 0
        %799 = vmatpush.bf16.msra.mxu0 0
        %800 = vmatpush.bf16.msra.mxu0 0
        %801 = vmatpush.bf16.msra.mxu0 0
        %802 = vmatpush.bf16.msra.mxu0 %v790
        %803 = vmatmul.bf16.gmra.mxu0 %v787
        %v804 = vpop.f32.mrf.mxu0
        %v805 = vadd.f32 0.0, %v804
        %v806 = vpop.f32.mrf.mxu0
        %807 = vdwg.mxu0
        %808 = vmatpush.bf16.msra.mxu0 0
        %809 = vmatpush.bf16.msra.mxu0 0
        %810 = vmatpush.bf16.msra.mxu0 0
        %811 = vmatpush.bf16.msra.mxu0 0
        %812 = vmatpush.bf16.msra.mxu0 0
        %813 = vmatpush.bf16.msra.mxu0 0
        %814 = vmatpush.bf16.msra.mxu0 0
        %815 = vmatpush.bf16.msra.mxu0 %v793
        %816 = vmatmul.bf16.gmra.mxu0 %v787
        %v817 = vpop.f32.mrf.mxu0
        %v818 = vadd.f32 0.0, %v817
        %v819 = vpop.f32.mrf.mxu0
        %820 = vdwg.mxu0
        %v821 = vadd.f32 %v773, %v805
        %v822 = vadd.f32 %v774, %v818
        %v823 = vpack.c.bf16 %v822, %v821
        %824 = vst [vmem:[%s311] sm:$0xff] %v823
        %s825 = sadd.s32 %s26, %s27
        %s826 = smul.u32 %s825, 256
        %v827 = vlaneseq
        %v828 = vand.u32 %v827, 127
        %v829 = vadd.s32 %v828, 128
        %v830 = vstv %s826
        %v831 = vadd.s32 %v830, %v828
        %v832 = vadd.s32 %v830, %v829
        %s833 = scvt.s32.f32 %s826
        %s834 = sadd.f32 %s833, 0.5
        %s835 = smul.f32 %s834, 0.055555556
        %s836 = sfloor.f32 %s835
        %s837 = smul.f32 %s836, 18.0
        %s838 = ssub.f32 %s833, %s837
        %v839 = vcvt.s32.f32 %v828
        %v840 = vcvt.s32.f32 %v829
        %v841 = vstv %s838
        %v842 = vadd.f32 %v841, %v839
        %v843 = vadd.f32 %v841, %v840
        %v844 = vadd.f32 %v842, 0.5
        %v845 = vadd.f32 %v843, 0.5
        %v846 = vmul.f32 %v844, 0.055555556
        %v847 = vmul.f32 %v845, 0.055555556
        %v848 = vfloor.f32 %v846
        %v849 = vfloor.f32 %v847
        %v850 = vmul.f32 %v848, 18.0
        %v851 = vmul.f32 %v849, 18.0
        %v852 = vsub.f32 %v842, %v850
        %v853 = vsub.f32 %v843, %v851
        %vm854 = vcmp.lt.f32.partialorder %v852, 16.0
        %vm855 = vcmp.lt.f32.partialorder %v853, 16.0
        %vm856 = vcmp.lt.s32.totalorder %v831, 288
        %vm857 = vcmp.lt.s32.totalorder %v832, 288
        %vm858 = vmand %vm854, %vm856
        %vm859 = vmand %vm855, %vm857
        %v860 = vsel %vm858, 1, 0
        %v861 = vsel %vm859, 1, 0
        %vm862 = vcmp.eq.s32.totalorder %v860, 1
        %vm863 = vcmp.eq.s32.totalorder %v861, 1
        %v864 = vsel %vm862, %v821, 0.0
        %v865 = vsel %vm863, %v822, 0.0
        %v866 = vld [vmem:[%s379] sm:$0xff]
        %v867 = vadd.f32 %v864, %v865
        %868 = vadd.xlane.f32.xlu0 %v867
        %v869 = vpop.xlane.xlu0 %868
        %v870 = vadd.f32 %v866, %v869
        %vm871 = vcmask 7168
        %872 = vst.msk [vmem:[%s379] sm:$0xff] %vm871, %v870
        %v873 = vld [vmem:[%s387] sm:$0xff]
        %v874 = vmul.f32 %v864, %v864
        %v875 = vmul.f32 %v865, %v865
        %v876 = vadd.f32 %v874, %v875
        %877 = vadd.xlane.f32.xlu0 %v876
        %v878 = vpop.xlane.xlu0 %877
        %v879 = vadd.f32 %v873, %v878
        %880 = vst.msk [vmem:[%s387] sm:$0xff] %vm871, %v879
        %s881 = sand.u32 %s136, 1
        %s882 = scalar_lea.sflag [#allocation3], %s881
        %s883 = sand.u32 %s136, 1
        %s884 = smul.addr %s883, 8
        %s885 = scalar_lea.vmem [#allocation2], %s884
        %p886 = scmp.lt.s32.totalorder %s25, 1
        %s887 = scalar_select %p886, %s25, 1
        %p888 = scmp.lt.s32.totalorder %s26, 1
        %s889 = scalar_select %p888, %s26, 1
        %s890 = smul.addr %s887, 2
        %s891 = sadd.s32 %s889, %s890
        %s892 = smul.addr %s891, 8
        %s893 = scalar_lea.vmem %s4, %s892
        %p894 = scmp.lt.s32.totalorder %s25, 1
        %s895 = scalar_select %p894, %s25, 1
        %p896 = scmp.lt.s32.totalorder %s26, 1
        %s897 = scalar_select %p896, %s26, 1
        %s898 = smul.addr %s895, 2
        %s899 = sadd.s32 %s897, %s898
        %s900 = smul.addr %s899, 8
        %s901 = scalar_lea.vmem %s5, %s900
        // Predicated region
        $region37: #{tpu_custom_call.1} parent=31 // pred_check
          %p902 = pneg %p146
        $region38: #{tpu_custom_call.1} parent=31 // pred_check_branch
          %904 = sbr.rel (%p902) target = $region40
        $region39: #{tpu_custom_call.1} parent=31 // pred_region
          %s905 = sadd.s32 %s26, %s27
          %s906 = smul.u32 2, %s905
          %s907 = ssub.s32 3, %s906
          %p908 = scmp.lt.s32.totalorder %s907, 2
          %s909 = scalar_select %p908, %s907, 2
          %s910 = smul.u32 4, %s909
          %s911 = ssub.s32 8, %s910
          %s912 = sshll.u32 %s911, 4
          %913 = vsyncadd %s882, %s912
          %p914 = scmp.ne.s32.totalorder 0, %s910
          %s915 = smul.addr %s25, 3
          %s916 = sadd.s32 %s906, %s915
          %s917 = smul.addr %s916, 4
          %s918 = scalar_lea.hbm %s3, %s917
          %s919 = smul.u32 %s909, 4
          %s920 = sshll.u32 %s919, 4
          %s921 = sshll.u32 %s885, 4
          %s922 = int_to_ptr.vmem [resolvable:$true] %s921
          %s923 = sshll.u32 %s918, 4
          %s924 = int_to_ptr.hbm [resolvable:$true] %s923
          %926 = dma.vmem_to_hbm [thread:$0]  (%p914), %s922, %s920, %s924, %s882
        $region40: #{tpu_custom_call.1} parent=31 // pred_fallthru
          _
        // Predicated region
        $region41: #{tpu_custom_call.1} parent=31 // pred_check
          %p927 = pneg %p174
        $region42: #{tpu_custom_call.1} parent=31 // pred_check_branch
          %929 = sbr.rel (%p927) target = $region44
        $region43: #{tpu_custom_call.1} parent=31 // pred_region
          _
        $region44: #{tpu_custom_call.1} parent=31 // pred_fallthru
          _
        // Predicated region
        $region45: #{tpu_custom_call.1} parent=31 // pred_check
          %p930 = pneg %p202
        $region46: #{tpu_custom_call.1} parent=31 // pred_check_branch
          %932 = sbr.rel (%p930) target = $region48
        $region47: #{tpu_custom_call.1} parent=31 // pred_region
          _
        $region48: #{tpu_custom_call.1} parent=31 // pred_fallthru
          _
      $region32: #{tpu_custom_call.1} parent=5 // pred_fallthru
        _
      %p933 = scmp.le.s32.totalorder 2, %s15
      // Predicated region
      $region49: #{tpu_custom_call.1} parent=5 // pred_check
        %p934 = pneg %p933
      $region50: #{tpu_custom_call.1} parent=5 // pred_check_branch
        %936 = sbr.rel (%p934) target = $region52
      $region51: #{tpu_custom_call.1} parent=5 // pred_region
        %s937 = ssub.s32 %s15, 2
        // Predicated region
        $region53: #{tpu_custom_call.1} parent=51 // pred_check
          %p938 = pneg %p152
        $region54: #{tpu_custom_call.1} parent=51 // pred_check_branch
          %940 = sbr.rel (%p938) target = $region56
        $region55: #{tpu_custom_call.1} parent=51 // pred_region
          %s941 = sand.u32 %s137, 1
          %s942 = scalar_lea.sflag [#allocation3], %s941
          %s943 = sand.u32 %s137, 1
          %s944 = smul.addr %s943, 8
          %s945 = scalar_lea.vmem [#allocation2], %s944
          %947 = dma.done %s942, 128
        $region56: #{tpu_custom_call.1} parent=51 // pred_fallthru
          _
        // Predicated region
        $region57: #{tpu_custom_call.1} parent=51 // pred_check
          %p948 = pneg %p180
        $region58: #{tpu_custom_call.1} parent=51 // pred_check_branch
          %950 = sbr.rel (%p948) target = $region60
        $region59: #{tpu_custom_call.1} parent=51 // pred_region
          %p951 = scmp.lt.s32.totalorder %s28, 1
          %s952 = scalar_select %p951, %s28, 1
          %p953 = scmp.lt.s32.totalorder %s29, 1
          %s954 = scalar_select %p953, %s29, 1
          %s955 = smul.addr %s952, 2
          %s956 = sadd.s32 %s954, %s955
          %s957 = smul.addr %s956, 8
          %s958 = scalar_lea.vmem %s4, %s957
        $region60: #{tpu_custom_call.1} parent=51 // pred_fallthru
          _
        // Predicated region
        $region61: #{tpu_custom_call.1} parent=51 // pred_check
          %p959 = pneg %p208
        $region62: #{tpu_custom_call.1} parent=51 // pred_check_branch
          %961 = sbr.rel (%p959) target = $region64
        $region63: #{tpu_custom_call.1} parent=51 // pred_region
          %p962 = scmp.lt.s32.totalorder %s28, 1
          %s963 = scalar_select %p962, %s28, 1
          %p964 = scmp.lt.s32.totalorder %s29, 1
          %s965 = scalar_select %p964, %s29, 1
          %s966 = smul.addr %s963, 2
          %s967 = sadd.s32 %s965, %s966
          %s968 = smul.addr %s967, 8
          %s969 = scalar_lea.vmem %s5, %s968
        $region64: #{tpu_custom_call.1} parent=51 // pred_fallthru
          _
      $region52: #{tpu_custom_call.1} parent=5 // pred_fallthru
        _
    $region6: #{tpu_custom_call.1} parent=1 // loop_footer
      %s19 = sadd.s32 1, %s15
    $region7: #{tpu_custom_call.1} parent=1 // loop_footer_branch
      %14 = sbr.rel target = $region3
    $region8: #{tpu_custom_call.1} parent=1 // loop_exit
      _
    %970 = vsyncpa [#allocation3], 1
    %s971 = scalar_lea.sflag [#allocation3], 1
    %972 = vsyncpa %s971, 1

</llo_original>
